<compile_context>
chip_gen: v5e
topology: v5e:2x2
jax: 0.10.0
libtpu: 0.0.40
codegen_flags: <defaults>
</compile_context>

<pallas_src>
import jax
import jax.numpy as jnp
from jax.experimental import pallas as pl
from jax.experimental.pallas import tpu as pltpu


def _round_up(a, m):
    return ((a + m - 1) // m) * m


def vae_kernel(x_ref, eps_ref,
               w1_ref, b1_ref,      # img_to_hid                      (D, H),    (1, H)
               w23_ref, b23_ref,    # fused [hid_to_mean | hid_to_std] (H, 2*Zp), (1, 2*Zp)
               w4_ref, b4_ref,      # z_to_hid (Z rows zero-padded)   (Zp, H),   (1, H)
               w5_ref, b5_ref,      # hid_to_img                      (H, D),    (1, D)
               xrec_ref, musig_ref):
    zp = eps_ref.shape[-1]  # lane-aligned latent width (multiple of 128)

    def dense(act_f32, w_ref, b_ref):
        w = w_ref[...]
        # Cast the activation to the weight dtype only at the MXU input; accumulate in
        # f32.  All elementwise math stays f32 (v5e has no bf16 VPU/EUP).
        y = jnp.dot(act_f32.astype(w.dtype), w, preferred_element_type=jnp.float32)
        return y + b_ref[...].astype(jnp.float32)

    x = x_ref[...].astype(jnp.float32)

    # ---- encode ----
    h = jnp.maximum(dense(x, w1_ref, b1_ref), 0.0)            # ReLU
    musig = dense(h, w23_ref, b23_ref)                         # (T, 2*Zp) = [mu | sigma]
    mu = musig[:, :zp]                                         # free view (128-lane boundary)
    sigma = musig[:, zp:]

    # ---- reparametrize: z = mu + sigma * eps, eps ~ U[0,1) (torch.rand_like) ----
    z = mu + sigma * eps_ref[...].astype(jnp.float32)          # pad lanes stay exactly 0

    # ---- decode ----
    h2 = jnp.maximum(dense(z, w4_ref, b4_ref), 0.0)            # ReLU
    logits = dense(h2, w5_ref, b5_ref)

    xrec_ref[...] = jax.nn.sigmoid(logits).astype(xrec_ref.dtype)
    musig_ref[...] = musig.astype(musig_ref.dtype)             # lane-dense (T, 2*Zp) slab


def vae_forward(x, eps, params, *, batch_tile=None, out_dtype=None):
    B, D = x.shape
    Z = eps.shape[1]
    H = params["w1"].shape[1]
    Zp = _round_up(max(Z, 1), 128)               # lane-aligned latent width
    out_dtype = x.dtype if out_dtype is None else out_dtype

    # ---- per-chip VMEM budget ----------------------------------------------------
    try:
        vmem_cap = int(pltpu.get_tpu_info().vmem_capacity_bytes)
    except Exception:
        vmem_cap = 64 << 20                      # conservative (v7x-sized) fallback
    max_tile = 512 if vmem_cap <= (64 << 20) else 1024   # smaller cap on 64-MiB v7x

    # ---- batch tiling: >=2 parallel grid steps when B >= 16 (dual-TC v7x) ---------
    if batch_tile is None:
        if B >= 16:
            target_steps = max(2, pl.cdiv(B, max_tile))
            batch_tile = min(max_tile, _round_up(pl.cdiv(B, target_steps), 8))
        else:
            batch_tile = _round_up(B, 8)
    batch_tile = max(8, _round_up(int(batch_tile), 8))
    grid_steps = pl.cdiv(B, batch_tile)
    Bp = grid_steps * batch_tile                 # pad the batch instead of asserting

    # ---- pad inputs (rows) and eps (rows + lanes) ---------------------------------
    x_p = x if Bp == B else jnp.pad(x, ((0, Bp - B), (0, 0)))
    eps_p = jnp.pad(eps, ((0, Bp - B), (0, Zp - Z)))

    # ---- weights: fuse + lane-pad the mean/std projections, pad z_to_hid rows -----
    w1, b1 = params["w1"], params["b1"]
    wdt = params["w2"].dtype
    w23 = jnp.zeros((H, 2 * Zp), wdt).at[:, :Z].set(params["w2"]) \
                                     .at[:, Zp:Zp + Z].set(params["w3"])
    b23 = jnp.zeros((1, 2 * Zp), params["b2"].dtype).at[:, :Z].set(params["b2"]) \
                                                    .at[:, Zp:Zp + Z].set(params["b3"])
    w4 = jnp.zeros((Zp, H), params["w4"].dtype).at[:Z, :].set(params["w4"])
    b4 = params["b4"]
    w5, b5 = params["w5"], params["b5"]

    # ---- VMEM footprint -> vmem_limit_bytes (never the full physical VMEM) --------
    isz = lambda dt: jnp.dtype(dt).itemsize
    act_in = batch_tile * (D * isz(x.dtype) + Zp * isz(eps.dtype))
    act_out = batch_tile * (D + 2 * Zp) * isz(out_dtype)
    w_bytes = ((D * H + H * 2 * Zp + Zp * H + H * D) * isz(wdt)
               + (H + 2 * Zp + H + D) * isz(b1.dtype))
    vmem_bytes = 2 * (act_in + act_out) + 2 * w_bytes     # conservative (double-buffer all)
    vmem_limit = int(vmem_bytes * 1.5) + (4 << 20)
    vmem_limit = max(vmem_limit, 16 << 20)
    vmem_limit = min(vmem_limit, (vmem_cap * 3) // 4)

    # ---- cost estimate (lets XLA overlap the wrapper-side pad/split) --------------
    flops = 2 * Bp * (D * H + H * 2 * Zp + Zp * H + H * D)
    transcendentals = Bp * D                                    # sigmoid
    bytes_accessed = (Bp * D * isz(x.dtype) + Bp * Zp * isz(eps.dtype)
                      + Bp * (D + 2 * Zp) * isz(out_dtype) + w_bytes)
    cost = pl.CostEstimate(flops=flops, transcendentals=transcendentals,
                           bytes_accessed=bytes_accessed)

    def const_spec(shape):
        # Weights/biases: same block every grid step.  Single-buffer them when the grid
        # is actually pipelined (double-buffering a constant block only wastes VMEM).
        if grid_steps > 1:
            try:
                return pl.BlockSpec(shape, lambda i: (0, 0),
                                    pipeline_mode=pl.Buffered(1))
            except TypeError:   # JAX build without pipeline_mode: fall back cleanly
                pass
        return pl.BlockSpec(shape, lambda i: (0, 0))

    grid_spec = pltpu.PrefetchScalarGridSpec(
        num_scalar_prefetch=0,
        grid=(grid_steps,),
        in_specs=[
            pl.BlockSpec((batch_tile, D), lambda i: (i, 0)),      # x
            pl.BlockSpec((batch_tile, Zp), lambda i: (i, 0)),     # eps (lane-padded)
            const_spec((D, H)), const_spec((1, H)),               # img_to_hid
            const_spec((H, 2 * Zp)), const_spec((1, 2 * Zp)),     # fused mean|std (padded)
            const_spec((Zp, H)), const_spec((1, H)),              # z_to_hid (row-padded)
            const_spec((H, D)), const_spec((1, D)),               # hid_to_img
        ],
        out_specs=[
            pl.BlockSpec((batch_tile, D), lambda i: (i, 0)),       # x_reconstructed
            pl.BlockSpec((batch_tile, 2 * Zp), lambda i: (i, 0)),  # [mu | sigma] slab
        ],
    )

    out_shapes = (
        jax.ShapeDtypeStruct((Bp, D), out_dtype),
        jax.ShapeDtypeStruct((Bp, 2 * Zp), out_dtype),
    )

    xrec, musig = pl.pallas_call(
        vae_kernel,
        grid_spec=grid_spec,
        out_shape=out_shapes,
        cost_estimate=cost,
        compiler_params=pltpu.CompilerParams(
            dimension_semantics=(("parallel",) if grid_steps > 1 else ("arbitrary",)),
            vmem_limit_bytes=vmem_limit,
        ),
    )(x_p, eps_p, w1, b1, w23, b23, w4, b4, w5, b5)

    # Wrapper-side layout plumbing: drop batch padding, pick the real Z lanes.
    return xrec[:B], musig[:B, :Z], musig[:B, Zp:Zp + Z]


def init_params(key, input_dim, h_dim, z_dim, *, weight_dtype=jnp.float32):
    """nn.Linear-style init U(-1/sqrt(fan_in), 1/sqrt(fan_in)); weights stored
    pre-transposed (in, out) and optionally cast to bf16 (recommended on all of
    v5e/v6e/v7x -- bf16-native MXU, halves weight HBM bytes).  Biases stay f32."""
    def linear(k, fan_in, fan_out):
        kw, kb = jax.random.split(k)
        bound = 1.0 / jnp.sqrt(fan_in)
        w = jax.random.uniform(kw, (fan_in, fan_out), jnp.float32, -bound, bound)
        b = jax.random.uniform(kb, (1, fan_out), jnp.float32, -bound, bound)
        return w.astype(weight_dtype), b

    k1, k2, k3, k4, k5 = jax.random.split(key, 5)
    w1, b1 = linear(k1, input_dim, h_dim)   # img_to_hid
    w2, b2 = linear(k2, h_dim, z_dim)       # hid_to_mean
    w3, b3 = linear(k3, h_dim, z_dim)       # hid_to_std
    w4, b4 = linear(k4, z_dim, h_dim)       # z_to_hid
    w5, b5 = linear(k5, h_dim, input_dim)   # hid_to_img
    return dict(w1=w1, b1=b1, w2=w2, b2=b2, w3=w3, b3=b3,
                w4=w4, b4=b4, w5=w5, b5=b5)


def vae_forward_ref(x, eps, p):
    """Pure-JAX f32 reference of the PyTorch forward (weights upcast to f32)."""
    f32 = lambda a: a.astype(jnp.float32)
    h = jnp.maximum(f32(x) @ f32(p["w1"]) + f32(p["b1"]), 0.0)
    mu = h @ f32(p["w2"]) + f32(p["b2"])
    sigma = h @ f32(p["w3"]) + f32(p["b3"])
    z = mu + sigma * f32(eps)
    h2 = jnp.maximum(z @ f32(p["w4"]) + f32(p["b4"]), 0.0)
    xrec = jax.nn.sigmoid(h2 @ f32(p["w5"]) + f32(p["b5"]))
    return xrec, mu, sigma


if __name__ == "__main__":
    # Small shapes consistent with the module (input_dim, h_dim, z_dim).
    B, INPUT_DIM, H_DIM, Z_DIM = 16, 256, 128, 32

    key = jax.random.PRNGKey(0)
    k_params, k_x, k_eps = jax.random.split(key, 3)

    x = jax.random.uniform(k_x, (B, INPUT_DIM), jnp.float32)     # image-like input in [0,1)
    eps = jax.random.uniform(k_eps, (B, Z_DIM), jnp.float32)     # torch.rand_like(sigma)

    # 1) f32 weights + f32 I/O: tight check against the pure-JAX reference.
    params_f32 = init_params(k_params, INPUT_DIM, H_DIM, Z_DIM, weight_dtype=jnp.float32)
    xrec, mu, sigma = vae_forward(x, eps, params_f32)
    jax.block_until_ready((xrec, mu, sigma))
    xrec_r, mu_r, sigma_r = vae_forward_ref(x, eps, params_f32)
    assert jnp.allclose(xrec, xrec_r, atol=1e-4, rtol=1e-4)
    assert jnp.allclose(mu, mu_r, atol=1e-4, rtol=1e-4)
    assert jnp.allclose(sigma, sigma_r, atol=1e-4, rtol=1e-4)

    # 2) bf16 weights + bf16 activation I/O (the recommended HBM-bound configuration
    #    on all generations): f32 MXU accumulation preserved, so compare loosely.
    params_bf16 = init_params(k_params, INPUT_DIM, H_DIM, Z_DIM, weight_dtype=jnp.bfloat16)
    x_bf16 = x.astype(jnp.bfloat16)
    eps_bf16 = eps.astype(jnp.bfloat16)
    xrec_b, mu_b, sigma_b = vae_forward(x_bf16, eps_bf16, params_bf16,
                                        out_dtype=jnp.bfloat16)
    jax.block_until_ready((xrec_b, mu_b, sigma_b))
    xrec_rb, mu_rb, sigma_rb = vae_forward_ref(x_bf16, eps_bf16, params_bf16)
    assert jnp.allclose(xrec_b.astype(jnp.float32), xrec_rb, atol=5e-2, rtol=5e-2)
    assert jnp.allclose(mu_b.astype(jnp.float32), mu_rb, atol=5e-2, rtol=5e-2)
    assert jnp.allclose(sigma_b.astype(jnp.float32), sigma_rb, atol=5e-2, rtol=5e-2)

    print("KERNEL_OK")
</pallas_src>

<mosaic_0001>
module attributes {stable_mosaic.version = 11 : i64} {
  func.func @vae_kernel(%arg0: i32, %arg1: memref<8x256xf32, #tpu.memory_space<vmem>>, %arg2: memref<8x128xf32, #tpu.memory_space<vmem>>, %arg3: memref<256x128xf32, #tpu.memory_space<vmem>>, %arg4: memref<1x128xf32, #tpu.memory_space<vmem>>, %arg5: memref<128x256xf32, #tpu.memory_space<vmem>>, %arg6: memref<1x256xf32, #tpu.memory_space<vmem>>, %arg7: memref<128x128xf32, #tpu.memory_space<vmem>>, %arg8: memref<1x128xf32, #tpu.memory_space<vmem>>, %arg9: memref<128x256xf32, #tpu.memory_space<vmem>>, %arg10: memref<1x256xf32, #tpu.memory_space<vmem>>, %arg11: memref<8x256xf32, #tpu.memory_space<vmem>>, %arg12: memref<8x256xf32, #tpu.memory_space<vmem>>) attributes {dimension_semantics = [#tpu.dimension_semantics<parallel>], iteration_bounds = array<i64: 2>, scalar_prefetch = 0 : i64, scratch_operands = 0 : i64, tpu.core_type = #tpu.core_type<tc>, window_params = [{transform_indices = @transform_0, window_bounds = array<i64: 8, 256>}, {transform_indices = @transform_1, window_bounds = array<i64: 8, 128>}, {pipeline_mode = #tpu.pipeline_mode<synchronous>, transform_indices = @transform_2, window_bounds = array<i64: 256, 128>}, {pipeline_mode = #tpu.pipeline_mode<synchronous>, transform_indices = @transform_3, window_bounds = array<i64: 1, 128>}, {pipeline_mode = #tpu.pipeline_mode<synchronous>, transform_indices = @transform_4, window_bounds = array<i64: 128, 256>}, {pipeline_mode = #tpu.pipeline_mode<synchronous>, transform_indices = @transform_5, window_bounds = array<i64: 1, 256>}, {pipeline_mode = #tpu.pipeline_mode<synchronous>, transform_indices = @transform_6, window_bounds = array<i64: 128, 128>}, {pipeline_mode = #tpu.pipeline_mode<synchronous>, transform_indices = @transform_7, window_bounds = array<i64: 1, 128>}, {pipeline_mode = #tpu.pipeline_mode<synchronous>, transform_indices = @transform_8, window_bounds = array<i64: 128, 256>}, {pipeline_mode = #tpu.pipeline_mode<synchronous>, transform_indices = @transform_9, window_bounds = array<i64: 1, 256>}, {transform_indices = @transform_10, window_bounds = array<i64: 8, 256>}, {transform_indices = @transform_11, window_bounds = array<i64: 8, 256>}]} {
    %c0 = arith.constant 0 : index
    %c0_0 = arith.constant 0 : index
    %0 = vector.load %arg1[%c0, %c0_0] : memref<8x256xf32, #tpu.memory_space<vmem>>, vector<8x256xf32>
    %c0_1 = arith.constant 0 : index
    %c0_2 = arith.constant 0 : index
    %1 = vector.load %arg3[%c0_1, %c0_2] : memref<256x128xf32, #tpu.memory_space<vmem>>, vector<256x128xf32>
    %cst = arith.constant dense<0.000000e+00> : vector<8x128xf32>
    %2 = tpu.matmul %0, %1, %cst {dimension_numbers = #tpu.dot_dimension_numbers<[1], [0], [0], [1], [0, 0, 1, 1], [], []>} : vector<8x256xf32>, vector<256x128xf32>, vector<8x128xf32> -> vector<8x128xf32>
    %c0_3 = arith.constant 0 : index
    %c0_4 = arith.constant 0 : index
    %3 = vector.load %arg4[%c0_3, %c0_4] : memref<1x128xf32, #tpu.memory_space<vmem>>, vector<1x128xf32>
    %4 = vector.broadcast %3 : vector<1x128xf32> to vector<8x128xf32>
    %5 = arith.addf %2, %4 : vector<8x128xf32>
    %cst_5 = arith.constant 0.000000e+00 : f32
    %6 = vector.broadcast %cst_5 : f32 to vector<8x128xf32>
    %7 = arith.maximumf %5, %6 : vector<8x128xf32>
    %c0_6 = arith.constant 0 : index
    %c0_7 = arith.constant 0 : index
    %8 = vector.load %arg5[%c0_6, %c0_7] : memref<128x256xf32, #tpu.memory_space<vmem>>, vector<128x256xf32>
    %cst_8 = arith.constant dense<0.000000e+00> : vector<8x256xf32>
    %9 = tpu.matmul %7, %8, %cst_8 {dimension_numbers = #tpu.dot_dimension_numbers<[1], [0], [0], [1], [0, 0, 1, 1], [], []>} : vector<8x128xf32>, vector<128x256xf32>, vector<8x256xf32> -> vector<8x256xf32>
    %c0_9 = arith.constant 0 : index
    %c0_10 = arith.constant 0 : index
    %10 = vector.load %arg6[%c0_9, %c0_10] : memref<1x256xf32, #tpu.memory_space<vmem>>, vector<1x256xf32>
    %11 = vector.broadcast %10 : vector<1x256xf32> to vector<8x256xf32>
    %12 = arith.addf %9, %11 : vector<8x256xf32>
    %13 = vector.extract_strided_slice %12 {offsets = [0, 0], sizes = [8, 128], strides = [1, 1]} : vector<8x256xf32> to vector<8x128xf32>
    %14 = vector.extract_strided_slice %12 {offsets = [0, 128], sizes = [8, 128], strides = [1, 1]} : vector<8x256xf32> to vector<8x128xf32>
    %c0_11 = arith.constant 0 : index
    %c0_12 = arith.constant 0 : index
    %15 = vector.load %arg2[%c0_11, %c0_12] : memref<8x128xf32, #tpu.memory_space<vmem>>, vector<8x128xf32>
    %16 = arith.mulf %14, %15 : vector<8x128xf32>
    %17 = arith.addf %13, %16 : vector<8x128xf32>
    %c0_13 = arith.constant 0 : index
    %c0_14 = arith.constant 0 : index
    %18 = vector.load %arg7[%c0_13, %c0_14] : memref<128x128xf32, #tpu.memory_space<vmem>>, vector<128x128xf32>
    %cst_15 = arith.constant dense<0.000000e+00> : vector<8x128xf32>
    %19 = tpu.matmul %17, %18, %cst_15 {dimension_numbers = #tpu.dot_dimension_numbers<[1], [0], [0], [1], [0, 0, 1, 1], [], []>} : vector<8x128xf32>, vector<128x128xf32>, vector<8x128xf32> -> vector<8x128xf32>
    %c0_16 = arith.constant 0 : index
    %c0_17 = arith.constant 0 : index
    %20 = vector.load %arg8[%c0_16, %c0_17] : memref<1x128xf32, #tpu.memory_space<vmem>>, vector<1x128xf32>
    %21 = vector.broadcast %20 : vector<1x128xf32> to vector<8x128xf32>
    %22 = arith.addf %19, %21 : vector<8x128xf32>
    %cst_18 = arith.constant 0.000000e+00 : f32
    %23 = vector.broadcast %cst_18 : f32 to vector<8x128xf32>
    %24 = arith.maximumf %22, %23 : vector<8x128xf32>
    %c0_19 = arith.constant 0 : index
    %c0_20 = arith.constant 0 : index
    %25 = vector.load %arg9[%c0_19, %c0_20] : memref<128x256xf32, #tpu.memory_space<vmem>>, vector<128x256xf32>
    %cst_21 = arith.constant dense<0.000000e+00> : vector<8x256xf32>
    %26 = tpu.matmul %24, %25, %cst_21 {dimension_numbers = #tpu.dot_dimension_numbers<[1], [0], [0], [1], [0, 0, 1, 1], [], []>} : vector<8x128xf32>, vector<128x256xf32>, vector<8x256xf32> -> vector<8x256xf32>
    %c0_22 = arith.constant 0 : index
    %c0_23 = arith.constant 0 : index
    %27 = vector.load %arg10[%c0_22, %c0_23] : memref<1x256xf32, #tpu.memory_space<vmem>>, vector<1x256xf32>
    %28 = vector.broadcast %27 : vector<1x256xf32> to vector<8x256xf32>
    %29 = arith.addf %26, %28 : vector<8x256xf32>
    %30 = arith.negf %29 : vector<8x256xf32>
    %31 = math.exp %30 : vector<8x256xf32>
    %cst_24 = arith.constant 1.000000e+00 : f32
    %32 = vector.broadcast %cst_24 : f32 to vector<8x256xf32>
    %33 = arith.addf %32, %31 : vector<8x256xf32>
    %34 = arith.divf %32, %33 : vector<8x256xf32>
    %c0_25 = arith.constant 0 : index
    %c0_26 = arith.constant 0 : index
    %35 = vector.load %arg11[%c0_25, %c0_26] : memref<8x256xf32, #tpu.memory_space<vmem>>, vector<8x256xf32>
    tpu.vector_store %arg11[%c0_25, %c0_26], %34 {strides = array<i32>} : memref<8x256xf32, #tpu.memory_space<vmem>>, vector<8x256xf32>,
    %c0_27 = arith.constant 0 : index
    %c0_28 = arith.constant 0 : index
    %36 = vector.load %arg12[%c0_27, %c0_28] : memref<8x256xf32, #tpu.memory_space<vmem>>, vector<8x256xf32>
    tpu.vector_store %arg12[%c0_27, %c0_28], %12 {strides = array<i32>} : memref<8x256xf32, #tpu.memory_space<vmem>>, vector<8x256xf32>,
    return
  }
  func.func @transform_0(%arg0: i32) -> (i32, i32) {
    %c0_i32 = arith.constant 0 : i32
    %c0_i32_0 = arith.constant 0 : i32
    return %arg0, %c0_i32 : i32, i32
  }
  func.func @transform_1(%arg0: i32) -> (i32, i32) {
    %c0_i32 = arith.constant 0 : i32
    %c0_i32_0 = arith.constant 0 : i32
    return %arg0, %c0_i32 : i32, i32
  }
  func.func @transform_2(%arg0: i32) -> (i32, i32) {
    %c0_i32 = arith.constant 0 : i32
    %c0_i32_0 = arith.constant 0 : i32
    %c0_i32_1 = arith.constant 0 : i32
    return %c0_i32, %c0_i32_0 : i32, i32
  }
  func.func @transform_3(%arg0: i32) -> (i32, i32) {
    %c0_i32 = arith.constant 0 : i32
    %c0_i32_0 = arith.constant 0 : i32
    %c0_i32_1 = arith.constant 0 : i32
    return %c0_i32, %c0_i32_0 : i32, i32
  }
  func.func @transform_4(%arg0: i32) -> (i32, i32) {
    %c0_i32 = arith.constant 0 : i32
    %c0_i32_0 = arith.constant 0 : i32
    %c0_i32_1 = arith.constant 0 : i32
    return %c0_i32, %c0_i32_0 : i32, i32
  }
  func.func @transform_5(%arg0: i32) -> (i32, i32) {
    %c0_i32 = arith.constant 0 : i32
    %c0_i32_0 = arith.constant 0 : i32
    %c0_i32_1 = arith.constant 0 : i32
    return %c0_i32, %c0_i32_0 : i32, i32
  }
  func.func @transform_6(%arg0: i32) -> (i32, i32) {
    %c0_i32 = arith.constant 0 : i32
    %c0_i32_0 = arith.constant 0 : i32
    %c0_i32_1 = arith.constant 0 : i32
    return %c0_i32, %c0_i32_0 : i32, i32
  }
  func.func @transform_7(%arg0: i32) -> (i32, i32) {
    %c0_i32 = arith.constant 0 : i32
    %c0_i32_0 = arith.constant 0 : i32
    %c0_i32_1 = arith.constant 0 : i32
    return %c0_i32, %c0_i32_0 : i32, i32
  }
  func.func @transform_8(%arg0: i32) -> (i32, i32) {
    %c0_i32 = arith.constant 0 : i32
    %c0_i32_0 = arith.constant 0 : i32
    %c0_i32_1 = arith.constant 0 : i32
    return %c0_i32, %c0_i32_0 : i32, i32
  }
  func.func @transform_9(%arg0: i32) -> (i32, i32) {
    %c0_i32 = arith.constant 0 : i32
    %c0_i32_0 = arith.constant 0 : i32
    %c0_i32_1 = arith.constant 0 : i32
    return %c0_i32, %c0_i32_0 : i32, i32
  }
  func.func @transform_10(%arg0: i32) -> (i32, i32) {
    %c0_i32 = arith.constant 0 : i32
    %c0_i32_0 = arith.constant 0 : i32
    return %arg0, %c0_i32 : i32, i32
  }
  func.func @transform_11(%arg0: i32) -> (i32, i32) {
    %c0_i32 = arith.constant 0 : i32
    %c0_i32_0 = arith.constant 0 : i32
    return %arg0, %c0_i32 : i32, i32
  }
}

</mosaic_0001>

<llo_original>
// kernel: tpu_custom_call.1
$region0: #{tpu_custom_call.1}
  #allocation0 [shape = 'u32[]', space=smem, size = 0x4, offset = 0x4, fixed_abs, tag = 'smem constant byte address 0x4 - core index']
  #allocation1 [shape = 'u32[72,128]{1,0:T(1,128)}', space=vmem, size = 0x9000, scoped, tag = 'internal scratch']
  %s0 = inlined_call_operand.hbm [shape: f32[16,256], index: 0, kind: input, shape index: {}]
  %s1 = inlined_call_operand.hbm [shape: f32[16,128], index: 1, kind: input, shape index: {}]
  %s2 = inlined_call_operand.hbm [shape: f32[256,128], index: 2, kind: input, shape index: {}]
  %s3 = inlined_call_operand.hbm [shape: f32[1,128], index: 3, kind: input, shape index: {}]
  %s4 = inlined_call_operand.hbm [shape: f32[128,256], index: 4, kind: input, shape index: {}]
  %s5 = inlined_call_operand.vmem [shape: f32[1,256], index: 5, kind: input, shape index: {}]
  %s6 = inlined_call_operand.hbm [shape: f32[128,128], index: 6, kind: input, shape index: {}]
  %s7 = inlined_call_operand.vmem [shape: f32[1,128], index: 7, kind: input, shape index: {}]
  %s8 = inlined_call_operand.hbm [shape: f32[128,256], index: 8, kind: input, shape index: {}]
  %s9 = inlined_call_operand.vmem [shape: f32[1,256], index: 9, kind: input, shape index: {}]
  %s10 = inlined_call_operand.hbm [shape: f32[16,256], index: 10, kind: output, shape index: {0}]
  %s11 = inlined_call_operand.hbm [shape: f32[16,256], index: 11, kind: output, shape index: {1}]
  %12 = xla_tuple %s10, %s11
  %s13 = sld [smem:[#allocation0]]
  $region109: #{tpu_custom_call.1} parent=0
    _
  %s15 = ssub.s32 1, %s13
  %s16 = scalar_select 0, %s15, %s13
  $region1: #{tpu_custom_call.1} parent=0
    #allocation2 [shape = 'u8[16384]{0}', space=vmem, size = 0x4000, scoped, tag = 'input window, operand 0']
    #allocation3 [shape = 's32[2]{0}', space=sflag, size = 0x8, scoped, tag = 'scoped memory for tpu_custom_call.1']
    #allocation4 [shape = 's32[2]{0}', space=sflag, size = 0x8, scoped, tag = 'scoped memory for tpu_custom_call.1']
    #allocation5 [shape = 'u8[8192]{0}', space=vmem, size = 0x2000, scoped, tag = 'input window, operand 1']
    #allocation6 [shape = 's32[2]{0}', space=sflag, size = 0x8, scoped, tag = 'scoped memory for tpu_custom_call.1']
    #allocation7 [shape = 'u8[131072]{0}', space=vmem, size = 0x20000, scoped, tag = 'input window, operand 2, single buffered']
    #allocation8 [shape = 'u8[512]{0}', space=vmem, size = 0x400, scoped, tag = 'input window, operand 3, single buffered']
    #allocation9 [shape = 's32[1]{0}', space=sflag, size = 0x4, scoped, tag = 'scoped memory for tpu_custom_call.1']
    #allocation10 [shape = 'u8[131072]{0}', space=vmem, size = 0x20000, scoped, tag = 'input window, operand 4, single buffered']
    #allocation11 [shape = 'u8[65536]{0}', space=vmem, size = 0x10000, scoped, tag = 'input window, operand 6, single buffered']
    #allocation12 [shape = 's32[1]{0}', space=sflag, size = 0x4, scoped, tag = 'scoped memory for tpu_custom_call.1']
    #allocation13 [shape = 'u8[131072]{0}', space=vmem, size = 0x20000, scoped, tag = 'input window, operand 8, single buffered']
    #allocation14 [shape = 'u8[16384]{0}', space=vmem, size = 0x4000, scoped, tag = 'output window, operand 0']
    #allocation15 [shape = 'u8[16384]{0}', space=vmem, size = 0x4000, scoped, tag = 'output window, operand 1']
    #allocation16 [shape = 's32[2]{0}', space=sflag, size = 0x8, scoped, tag = 'scoped memory for tpu_custom_call.1']
    %17 = vsyncpa [#allocation3], 0
    %s18 = scalar_lea.sflag [#allocation3], 1
    %19 = vsyncpa %s18, 0
    %20 = vsyncpa [#allocation6], 0
    %s21 = scalar_lea.sflag [#allocation6], 1
    %22 = vsyncpa %s21, 0
    %23 = vsyncpa [#allocation9], 0
    %24 = vsyncpa [#allocation12], 0
    %25 = vsyncpa [#allocation4], 0
    %s26 = scalar_lea.sflag [#allocation4], 1
    %27 = vsyncpa %s26, 0
    %28 = vsyncpa [#allocation16], 0
    %s29 = scalar_lea.sflag [#allocation16], 1
    %30 = vsyncpa %s29, 0
    loop: start=0, step=1, limit=4
    $region2: #{tpu_custom_call.1} parent=1 // loop_pre_header
      _
    $region3: #{tpu_custom_call.1} parent=1 // loop_header
      %s32 = sphi 0, %s36
      %p33 = scmp.ge.s32.totalorder %s32, 4
      %s42 = sphi 0, %s44
      %s45 = sphi 0, %s42
      %s46 = sphi 0, %s45
      %s62 = sphi 0, %s46
      %s68 = sphi 0, %s70
      %s71 = sphi 0, %s68
      %s72 = sphi 0, %s71
      %s88 = sphi 0, %s72
      %s92 = sphi 0, %s92
      %s94 = sphi 0, %s92
      %s95 = sphi 0, %s94
      %s109 = sphi 0, %s95
      %s113 = sphi 0, %s113
      %s115 = sphi 0, %s113
      %s116 = sphi 0, %s115
      %s130 = sphi 0, %s116
      %s134 = sphi 0, %s134
      %s136 = sphi 0, %s134
      %s137 = sphi 0, %s136
      %s151 = sphi 0, %s137
      %s155 = sphi 0, %s155
      %s157 = sphi 0, %s155
      %s158 = sphi 0, %s157
      %s172 = sphi 0, %s158
      %s176 = sphi 0, %s176
      %s178 = sphi 0, %s176
      %s179 = sphi 0, %s178
      %s193 = sphi 0, %s179
      %s197 = sphi 0, %s197
      %s199 = sphi 0, %s197
      %s200 = sphi 0, %s199
      %s214 = sphi 0, %s200
      %s218 = sphi 0, %s218
      %s220 = sphi 0, %s218
      %s221 = sphi 0, %s220
      %s235 = sphi 0, %s221
      %s239 = sphi 0, %s239
      %s241 = sphi 0, %s239
      %s242 = sphi 0, %s241
      %s256 = sphi 0, %s242
      %s262 = sphi 0, %s264
      %s265 = sphi 0, %s262
      %s266 = sphi 0, %s265
      %s282 = sphi 0, %s266
      %s288 = sphi 0, %s290
      %s291 = sphi 0, %s288
      %s292 = sphi 0, %s291
      %s308 = sphi 0, %s292
    $region4: #{tpu_custom_call.1} parent=1 // loop_header_branch
      %35 = sbr.rel (%p33) target = $region8
    $region5: #{tpu_custom_call.1} parent=1 // loop_body
      %s37 = ssub.s32 %s32, 1
      %s38 = ssub.s32 %s32, 2
      %s39 = sadd.s32 %s32, 1
      %s40 = ssub.s32 %s32, %s39
      %p41 = scmp.eq.s32.totalorder %s40, 0
      %s43 = sadd.s32 %s42, 1
      %s44 = scalar_select %p41, %s42, %s43
      %p47 = pneg %p41
      %p48 = scmp.eq.s32.totalorder %s32, 1
      %p49 = por %p47, %p48
      %p50 = scmp.ne.s32.totalorder %s42, %s45
      %p51 = scmp.eq.s32.totalorder %s32, 0
      %p52 = por %p50, %p51
      %p53 = scmp.ne.s32.totalorder %s42, %s45
      %p54 = scmp.eq.s32.totalorder %s37, 1
      %p55 = por %p53, %p54
      %p56 = scmp.ne.s32.totalorder %s45, %s46
      %p57 = scmp.eq.s32.totalorder %s37, 0
      %p58 = por %p56, %p57
      %p59 = scmp.ne.s32.totalorder %s45, %s46
      %p60 = scmp.eq.s32.totalorder %s38, 1
      %p61 = por %p59, %p60
      %p63 = scmp.ne.s32.totalorder %s46, %s62
      %p64 = scmp.eq.s32.totalorder %s38, 0
      %p65 = por %p63, %p64
      %s66 = ssub.s32 %s32, %s39
      %p67 = scmp.eq.s32.totalorder %s66, 0
      %s69 = sadd.s32 %s68, 1
      %s70 = scalar_select %p67, %s68, %s69
      %p73 = pneg %p67
      %p74 = scmp.eq.s32.totalorder %s32, 1
      %p75 = por %p73, %p74
      %p76 = scmp.ne.s32.totalorder %s68, %s71
      %p77 = scmp.eq.s32.totalorder %s32, 0
      %p78 = por %p76, %p77
      %p79 = scmp.ne.s32.totalorder %s68, %s71
      %p80 = scmp.eq.s32.totalorder %s37, 1
      %p81 = por %p79, %p80
      %p82 = scmp.ne.s32.totalorder %s71, %s72
      %p83 = scmp.eq.s32.totalorder %s37, 0
      %p84 = por %p82, %p83
      %p85 = scmp.ne.s32.totalorder %s71, %s72
      %p86 = scmp.eq.s32.totalorder %s38, 1
      %p87 = por %p85, %p86
      %p89 = scmp.ne.s32.totalorder %s72, %s88
      %p90 = scmp.eq.s32.totalorder %s38, 0
      %p91 = por %p89, %p90
      %s93 = sadd.s32 %s92, 1
      %p96 = scmp.eq.s32.totalorder %s32, 1
      %p97 = scmp.ne.s32.totalorder %s92, %s94
      %p98 = scmp.eq.s32.totalorder %s32, 0
      %p99 = por %p97, %p98
      %p100 = scmp.ne.s32.totalorder %s92, %s94
      %p101 = scmp.eq.s32.totalorder %s37, 1
      %p102 = por %p100, %p101
      %p103 = scmp.ne.s32.totalorder %s94, %s95
      %p104 = scmp.eq.s32.totalorder %s37, 0
      %p105 = por %p103, %p104
      %p106 = scmp.ne.s32.totalorder %s94, %s95
      %p107 = scmp.eq.s32.totalorder %s38, 1
      %p108 = por %p106, %p107
      %p110 = scmp.ne.s32.totalorder %s95, %s109
      %p111 = scmp.eq.s32.totalorder %s38, 0
      %p112 = por %p110, %p111
      %s114 = sadd.s32 %s113, 1
      %p117 = scmp.eq.s32.totalorder %s32, 1
      %p118 = scmp.ne.s32.totalorder %s113, %s115
      %p119 = scmp.eq.s32.totalorder %s32, 0
      %p120 = por %p118, %p119
      %p121 = scmp.ne.s32.totalorder %s113, %s115
      %p122 = scmp.eq.s32.totalorder %s37, 1
      %p123 = por %p121, %p122
      %p124 = scmp.ne.s32.totalorder %s115, %s116
      %p125 = scmp.eq.s32.totalorder %s37, 0
      %p126 = por %p124, %p125
      %p127 = scmp.ne.s32.totalorder %s115, %s116
      %p128 = scmp.eq.s32.totalorder %s38, 1
      %p129 = por %p127, %p128
      %p131 = scmp.ne.s32.totalorder %s116, %s130
      %p132 = scmp.eq.s32.totalorder %s38, 0
      %p133 = por %p131, %p132
      %s135 = sadd.s32 %s134, 1
      %p138 = scmp.eq.s32.totalorder %s32, 1
      %p139 = scmp.ne.s32.totalorder %s134, %s136
      %p140 = scmp.eq.s32.totalorder %s32, 0
      %p141 = por %p139, %p140
      %p142 = scmp.ne.s32.totalorder %s134, %s136
      %p143 = scmp.eq.s32.totalorder %s37, 1
      %p144 = por %p142, %p143
      %p145 = scmp.ne.s32.totalorder %s136, %s137
      %p146 = scmp.eq.s32.totalorder %s37, 0
      %p147 = por %p145, %p146
      %p148 = scmp.ne.s32.totalorder %s136, %s137
      %p149 = scmp.eq.s32.totalorder %s38, 1
      %p150 = por %p148, %p149
      %p152 = scmp.ne.s32.totalorder %s137, %s151
      %p153 = scmp.eq.s32.totalorder %s38, 0
      %p154 = por %p152, %p153
      %s156 = sadd.s32 %s155, 1
      %p159 = scmp.eq.s32.totalorder %s32, 1
      %p160 = scmp.ne.s32.totalorder %s155, %s157
      %p161 = scmp.eq.s32.totalorder %s32, 0
      %p162 = por %p160, %p161
      %p163 = scmp.ne.s32.totalorder %s155, %s157
      %p164 = scmp.eq.s32.totalorder %s37, 1
      %p165 = por %p163, %p164
      %p166 = scmp.ne.s32.totalorder %s157, %s158
      %p167 = scmp.eq.s32.totalorder %s37, 0
      %p168 = por %p166, %p167
      %p169 = scmp.ne.s32.totalorder %s157, %s158
      %p170 = scmp.eq.s32.totalorder %s38, 1
      %p171 = por %p169, %p170
      %p173 = scmp.ne.s32.totalorder %s158, %s172
      %p174 = scmp.eq.s32.totalorder %s38, 0
      %p175 = por %p173, %p174
      %s177 = sadd.s32 %s176, 1
      %p180 = scmp.eq.s32.totalorder %s32, 1
      %p181 = scmp.ne.s32.totalorder %s176, %s178
      %p182 = scmp.eq.s32.totalorder %s32, 0
      %p183 = por %p181, %p182
      %p184 = scmp.ne.s32.totalorder %s176, %s178
      %p185 = scmp.eq.s32.totalorder %s37, 1
      %p186 = por %p184, %p185
      %p187 = scmp.ne.s32.totalorder %s178, %s179
      %p188 = scmp.eq.s32.totalorder %s37, 0
      %p189 = por %p187, %p188
      %p190 = scmp.ne.s32.totalorder %s178, %s179
      %p191 = scmp.eq.s32.totalorder %s38, 1
      %p192 = por %p190, %p191
      %p194 = scmp.ne.s32.totalorder %s179, %s193
      %p195 = scmp.eq.s32.totalorder %s38, 0
      %p196 = por %p194, %p195
      %s198 = sadd.s32 %s197, 1
      %p201 = scmp.eq.s32.totalorder %s32, 1
      %p202 = scmp.ne.s32.totalorder %s197, %s199
      %p203 = scmp.eq.s32.totalorder %s32, 0
      %p204 = por %p202, %p203
      %p205 = scmp.ne.s32.totalorder %s197, %s199
      %p206 = scmp.eq.s32.totalorder %s37, 1
      %p207 = por %p205, %p206
      %p208 = scmp.ne.s32.totalorder %s199, %s200
      %p209 = scmp.eq.s32.totalorder %s37, 0
      %p210 = por %p208, %p209
      %p211 = scmp.ne.s32.totalorder %s199, %s200
      %p212 = scmp.eq.s32.totalorder %s38, 1
      %p213 = por %p211, %p212
      %p215 = scmp.ne.s32.totalorder %s200, %s214
      %p216 = scmp.eq.s32.totalorder %s38, 0
      %p217 = por %p215, %p216
      %s219 = sadd.s32 %s218, 1
      %p222 = scmp.eq.s32.totalorder %s32, 1
      %p223 = scmp.ne.s32.totalorder %s218, %s220
      %p224 = scmp.eq.s32.totalorder %s32, 0
      %p225 = por %p223, %p224
      %p226 = scmp.ne.s32.totalorder %s218, %s220
      %p227 = scmp.eq.s32.totalorder %s37, 1
      %p228 = por %p226, %p227
      %p229 = scmp.ne.s32.totalorder %s220, %s221
      %p230 = scmp.eq.s32.totalorder %s37, 0
      %p231 = por %p229, %p230
      %p232 = scmp.ne.s32.totalorder %s220, %s221
      %p233 = scmp.eq.s32.totalorder %s38, 1
      %p234 = por %p232, %p233
      %p236 = scmp.ne.s32.totalorder %s221, %s235
      %p237 = scmp.eq.s32.totalorder %s38, 0
      %p238 = por %p236, %p237
      %s240 = sadd.s32 %s239, 1
      %p243 = scmp.eq.s32.totalorder %s32, 1
      %p244 = scmp.ne.s32.totalorder %s239, %s241
      %p245 = scmp.eq.s32.totalorder %s32, 0
      %p246 = por %p244, %p245
      %p247 = scmp.ne.s32.totalorder %s239, %s241
      %p248 = scmp.eq.s32.totalorder %s37, 1
      %p249 = por %p247, %p248
      %p250 = scmp.ne.s32.totalorder %s241, %s242
      %p251 = scmp.eq.s32.totalorder %s37, 0
      %p252 = por %p250, %p251
      %p253 = scmp.ne.s32.totalorder %s241, %s242
      %p254 = scmp.eq.s32.totalorder %s38, 1
      %p255 = por %p253, %p254
      %p257 = scmp.ne.s32.totalorder %s242, %s256
      %p258 = scmp.eq.s32.totalorder %s38, 0
      %p259 = por %p257, %p258
      %s260 = ssub.s32 %s32, %s39
      %p261 = scmp.eq.s32.totalorder %s260, 0
      %s263 = sadd.s32 %s262, 1
      %s264 = scalar_select %p261, %s262, %s263
      %p267 = pneg %p261
      %p268 = scmp.eq.s32.totalorder %s32, 1
      %p269 = por %p267, %p268
      %p270 = scmp.ne.s32.totalorder %s262, %s265
      %p271 = scmp.eq.s32.totalorder %s32, 0
      %p272 = por %p270, %p271
      %p273 = scmp.ne.s32.totalorder %s262, %s265
      %p274 = scmp.eq.s32.totalorder %s37, 1
      %p275 = por %p273, %p274
      %p276 = scmp.ne.s32.totalorder %s265, %s266
      %p277 = scmp.eq.s32.totalorder %s37, 0
      %p278 = por %p276, %p277
      %p279 = scmp.ne.s32.totalorder %s265, %s266
      %p280 = scmp.eq.s32.totalorder %s38, 1
      %p281 = por %p279, %p280
      %p283 = scmp.ne.s32.totalorder %s266, %s282
      %p284 = scmp.eq.s32.totalorder %s38, 0
      %p285 = por %p283, %p284
      %s286 = ssub.s32 %s32, %s39
      %p287 = scmp.eq.s32.totalorder %s286, 0
      %s289 = sadd.s32 %s288, 1
      %s290 = scalar_select %p287, %s288, %s289
      %p293 = pneg %p287
      %p294 = scmp.eq.s32.totalorder %s32, 1
      %p295 = por %p293, %p294
      %p296 = scmp.ne.s32.totalorder %s288, %s291
      %p297 = scmp.eq.s32.totalorder %s32, 0
      %p298 = por %p296, %p297
      %p299 = scmp.ne.s32.totalorder %s288, %s291
      %p300 = scmp.eq.s32.totalorder %s37, 1
      %p301 = por %p299, %p300
      %p302 = scmp.ne.s32.totalorder %s291, %s292
      %p303 = scmp.eq.s32.totalorder %s37, 0
      %p304 = por %p302, %p303
      %p305 = scmp.ne.s32.totalorder %s291, %s292
      %p306 = scmp.eq.s32.totalorder %s38, 1
      %p307 = por %p305, %p306
      %p309 = scmp.ne.s32.totalorder %s292, %s308
      %p310 = scmp.eq.s32.totalorder %s38, 0
      %p311 = por %p309, %p310
      %p312 = scmp.le.s32.totalorder 1, %s32
      %p313 = scmp.lt.s32.totalorder %s32, 3
      %p314 = pnand %p312, %p313
      %p315 = pneg %p314
      // Predicated region
      $region9: #{tpu_custom_call.1} parent=5 // pred_check
        _
      $region10: #{tpu_custom_call.1} parent=5 // pred_check_branch
        %317 = sbr.rel (%p314) target = $region12
      $region11: #{tpu_custom_call.1} parent=5 // pred_region
        %s318 = ssub.s32 %s32, 1
        // Predicated region
        $region13: #{tpu_custom_call.1} parent=11 // pred_check
          %p319 = pneg %p105
        $region14: #{tpu_custom_call.1} parent=11 // pred_check_branch
          %321 = sbr.rel (%p319) target = $region16
        $region15: #{tpu_custom_call.1} parent=11 // pred_region
          %323 = vsyncadd [#allocation6], 0
          %s324 = sshll.u32 %s2, 4
          %s325 = int_to_ptr.hbm [resolvable:$true] %s324
          %s326 = sshll.u32 [#allocation7], 4
          %s327 = int_to_ptr.vmem [resolvable:$true] %s326
          %332 = dma.hbm_to_vmem [thread:$0]  %s325, 4096, %s327, [#allocation6], 128, 128, 8
        $region16: #{tpu_custom_call.1} parent=11 // pred_fallthru
          _
        // Predicated region
        $region17: #{tpu_custom_call.1} parent=11 // pred_check
          %p333 = pneg %p126
        $region18: #{tpu_custom_call.1} parent=11 // pred_check_branch
          %335 = sbr.rel (%p333) target = $region20
        $region19: #{tpu_custom_call.1} parent=11 // pred_region
          %337 = vsyncadd [#allocation9], 0
          %s339 = sshll.u32 %s3, 4
          %s340 = int_to_ptr.hbm [resolvable:$true] %s339
          %s341 = sshll.u32 [#allocation8], 4
          %s342 = int_to_ptr.vmem [resolvable:$true] %s341
          %344 = dma.hbm_to_vmem [thread:$0]  %s340, 16, %s342, [#allocation9]
        $region20: #{tpu_custom_call.1} parent=11 // pred_fallthru
          _
        // Predicated region
        $region21: #{tpu_custom_call.1} parent=11 // pred_check
          %p345 = pneg %p147
        $region22: #{tpu_custom_call.1} parent=11 // pred_check_branch
          %347 = sbr.rel (%p345) target = $region24
        $region23: #{tpu_custom_call.1} parent=11 // pred_region
          %349 = vsyncadd [#allocation9], 0
          %s350 = sshll.u32 %s4, 4
          %s351 = int_to_ptr.hbm [resolvable:$true] %s350
          %s352 = sshll.u32 [#allocation10], 4
          %s353 = int_to_ptr.vmem [resolvable:$true] %s352
          %358 = dma.hbm_to_vmem [thread:$0]  %s351, 4096, %s353, [#allocation9], 256, 256, 16
        $region24: #{tpu_custom_call.1} parent=11 // pred_fallthru
          _
        // Predicated region
        $region25: #{tpu_custom_call.1} parent=11 // pred_check
          %p359 = pneg %p168
        $region26: #{tpu_custom_call.1} parent=11 // pred_check_branch
          %361 = sbr.rel (%p359) target = $region28
        $region27: #{tpu_custom_call.1} parent=11 // pred_region
          _
        $region28: #{tpu_custom_call.1} parent=11 // pred_fallthru
          _
        // Predicated region
        $region29: #{tpu_custom_call.1} parent=11 // pred_check
          %p362 = pneg %p189
        $region30: #{tpu_custom_call.1} parent=11 // pred_check_branch
          %364 = sbr.rel (%p362) target = $region32
        $region31: #{tpu_custom_call.1} parent=11 // pred_region
          %366 = vsyncadd [#allocation12], 0
          %s367 = sshll.u32 %s6, 4
          %s368 = int_to_ptr.hbm [resolvable:$true] %s367
          %s369 = sshll.u32 [#allocation11], 4
          %s370 = int_to_ptr.vmem [resolvable:$true] %s369
          %375 = dma.hbm_to_vmem [thread:$0]  %s368, 2048, %s370, [#allocation12], 128, 128, 8
        $region32: #{tpu_custom_call.1} parent=11 // pred_fallthru
          _
        // Predicated region
        $region33: #{tpu_custom_call.1} parent=11 // pred_check
          %p376 = pneg %p210
        $region34: #{tpu_custom_call.1} parent=11 // pred_check_branch
          %378 = sbr.rel (%p376) target = $region36
        $region35: #{tpu_custom_call.1} parent=11 // pred_region
          _
        $region36: #{tpu_custom_call.1} parent=11 // pred_fallthru
          _
        // Predicated region
        $region37: #{tpu_custom_call.1} parent=11 // pred_check
          %p379 = pneg %p231
        $region38: #{tpu_custom_call.1} parent=11 // pred_check_branch
          %381 = sbr.rel (%p379) target = $region40
        $region39: #{tpu_custom_call.1} parent=11 // pred_region
          %383 = vsyncadd [#allocation12], 0
          %s384 = sshll.u32 %s8, 4
          %s385 = int_to_ptr.hbm [resolvable:$true] %s384
          %s386 = sshll.u32 [#allocation13], 4
          %s387 = int_to_ptr.vmem [resolvable:$true] %s386
          %392 = dma.hbm_to_vmem [thread:$0]  %s385, 4096, %s387, [#allocation12], 256, 256, 16
        $region40: #{tpu_custom_call.1} parent=11 // pred_fallthru
          _
        // Predicated region
        $region41: #{tpu_custom_call.1} parent=11 // pred_check
          %p393 = pneg %p252
        $region42: #{tpu_custom_call.1} parent=11 // pred_check_branch
          %395 = sbr.rel (%p393) target = $region44
        $region43: #{tpu_custom_call.1} parent=11 // pred_region
          _
        $region44: #{tpu_custom_call.1} parent=11 // pred_fallthru
          _
      $region12: #{tpu_custom_call.1} parent=5 // pred_fallthru
        _
      %p396 = scmp.lt.s32.totalorder %s32, 2
      // Predicated region
      $region45: #{tpu_custom_call.1} parent=5 // pred_check
        %p397 = pneg %p396
      $region46: #{tpu_custom_call.1} parent=5 // pred_check_branch
        %399 = sbr.rel (%p397) target = $region48
      $region47: #{tpu_custom_call.1} parent=5 // pred_region
        // Predicated region
        $region49: #{tpu_custom_call.1} parent=47 // pred_check
          %p400 = pneg %p52
        $region50: #{tpu_custom_call.1} parent=47 // pred_check_branch
          %402 = sbr.rel (%p400) target = $region52
        $region51: #{tpu_custom_call.1} parent=47 // pred_region
          %s403 = sand.u32 %s42, 1
          %s404 = scalar_lea.sflag [#allocation3], %s403
          %s405 = sand.u32 %s42, 1
          %s406 = smul.addr %s405, 16
          %s407 = scalar_lea.vmem [#allocation2], %s406
          %409 = vsyncadd %s404, 0
          %s410 = smul.addr %s32, 2
          %s411 = smul.addr %s410, 8
          %s412 = scalar_lea.hbm %s0, %s411
          %s414 = sshll.u32 %s412, 4
          %s415 = int_to_ptr.hbm [resolvable:$true] %s414
          %s416 = sshll.u32 %s407, 4
          %s417 = int_to_ptr.vmem [resolvable:$true] %s416
          %419 = dma.hbm_to_vmem [thread:$0]  %s415, 256, %s417, %s404
        $region52: #{tpu_custom_call.1} parent=47 // pred_fallthru
          _
        // Predicated region
        $region53: #{tpu_custom_call.1} parent=47 // pred_check
          %p420 = pneg %p78
        $region54: #{tpu_custom_call.1} parent=47 // pred_check_branch
          %422 = sbr.rel (%p420) target = $region56
        $region55: #{tpu_custom_call.1} parent=47 // pred_region
          %s423 = sand.u32 %s32, 1
          %s424 = scalar_lea.sflag [#allocation6], %s423
          %s425 = sand.u32 %s68, 1
          %s426 = smul.addr %s425, 8
          %s427 = scalar_lea.vmem [#allocation5], %s426
          %429 = vsyncadd %s424, 0
          %s430 = smul.addr %s32, 8
          %s431 = scalar_lea.hbm %s1, %s430
          %s433 = sshll.u32 %s431, 4
          %s434 = int_to_ptr.hbm [resolvable:$true] %s433
          %s435 = sshll.u32 %s427, 4
          %s436 = int_to_ptr.vmem [resolvable:$true] %s435
          %438 = dma.hbm_to_vmem [thread:$0]  %s434, 128, %s436, %s424
        $region56: #{tpu_custom_call.1} parent=47 // pred_fallthru
          _
      $region48: #{tpu_custom_call.1} parent=5 // pred_fallthru
        _
      %p439 = scmp.le.s32.totalorder 1, %s32
      %p440 = scmp.lt.s32.totalorder %s32, 3
      %p441 = pnand %p439, %p440
      %p442 = pneg %p441
      // Predicated region
      $region57: #{tpu_custom_call.1} parent=5 // pred_check
        _
      $region58: #{tpu_custom_call.1} parent=5 // pred_check_branch
        %444 = sbr.rel (%p441) target = $region60
      $region59: #{tpu_custom_call.1} parent=5 // pred_region
        %s445 = ssub.s32 %s32, 1
        %s446 = sand.u32 %s45, 1
        %s447 = scalar_lea.sflag [#allocation3], %s446
        %s448 = sand.u32 %s45, 1
        %s449 = smul.addr %s448, 16
        %s450 = scalar_lea.vmem [#allocation2], %s449
        // Predicated region
        $region61: #{tpu_custom_call.1} parent=59 // pred_check
          %p451 = pneg %p58
        $region62: #{tpu_custom_call.1} parent=59 // pred_check_branch
          %453 = sbr.rel (%p451) target = $region64
        $region63: #{tpu_custom_call.1} parent=59 // pred_region
          %455 = dma.done %s447, 256
        $region64: #{tpu_custom_call.1} parent=59 // pred_fallthru
          _
        %s456 = sand.u32 %s37, 1
        %s457 = scalar_lea.sflag [#allocation6], %s456
        %s458 = sand.u32 %s71, 1
        %s459 = smul.addr %s458, 8
        %s460 = scalar_lea.vmem [#allocation5], %s459
        // Predicated region
        $region65: #{tpu_custom_call.1} parent=59 // pred_check
          %p461 = pneg %p84
        $region66: #{tpu_custom_call.1} parent=59 // pred_check_branch
          %463 = sbr.rel (%p461) target = $region68
        $region67: #{tpu_custom_call.1} parent=59 // pred_region
          %465 = dma.done %s457, 128
        $region68: #{tpu_custom_call.1} parent=59 // pred_fallthru
          _
        // Predicated region
        $region69: #{tpu_custom_call.1} parent=59 // pred_check
          %p466 = pneg %p105
        $region70: #{tpu_custom_call.1} parent=59 // pred_check_branch
          %468 = sbr.rel (%p466) target = $region72
        $region71: #{tpu_custom_call.1} parent=59 // pred_region
          %470 = dma.done [#allocation6], 4096
        $region72: #{tpu_custom_call.1} parent=59 // pred_fallthru
          _
        // Predicated region
        $region73: #{tpu_custom_call.1} parent=59 // pred_check
          %p471 = pneg %p126
        $region74: #{tpu_custom_call.1} parent=59 // pred_check_branch
          %473 = sbr.rel (%p471) target = $region76
        $region75: #{tpu_custom_call.1} parent=59 // pred_region
          %475 = dma.done [#allocation9], 16
        $region76: #{tpu_custom_call.1} parent=59 // pred_fallthru
          _
        // Predicated region
        $region77: #{tpu_custom_call.1} parent=59 // pred_check
          %p476 = pneg %p147
        $region78: #{tpu_custom_call.1} parent=59 // pred_check_branch
          %478 = sbr.rel (%p476) target = $region80
        $region79: #{tpu_custom_call.1} parent=59 // pred_region
          %480 = dma.done [#allocation9], 4096
        $region80: #{tpu_custom_call.1} parent=59 // pred_fallthru
          _
        // Predicated region
        $region81: #{tpu_custom_call.1} parent=59 // pred_check
          %p481 = pneg %p189
        $region82: #{tpu_custom_call.1} parent=59 // pred_check_branch
          %483 = sbr.rel (%p481) target = $region84
        $region83: #{tpu_custom_call.1} parent=59 // pred_region
          %485 = dma.done [#allocation12], 2048
        $region84: #{tpu_custom_call.1} parent=59 // pred_fallthru
          _
        // Predicated region
        $region85: #{tpu_custom_call.1} parent=59 // pred_check
          %p486 = pneg %p231
        $region86: #{tpu_custom_call.1} parent=59 // pred_check_branch
          %488 = sbr.rel (%p486) target = $region88
        $region87: #{tpu_custom_call.1} parent=59 // pred_region
          %490 = dma.done [#allocation12], 4096
        $region88: #{tpu_custom_call.1} parent=59 // pred_fallthru
          _
        %s491 = sand.u32 %s45, 1
        %s492 = scalar_lea.sflag [#allocation3], %s491
        %s493 = sand.u32 %s45, 1
        %s494 = smul.addr %s493, 16
        %s495 = scalar_lea.vmem [#allocation2], %s494
        %p496 = pneg %p58
        %p497 = pneg %p55
        %s498 = sand.u32 %s37, 1
        %s499 = scalar_lea.sflag [#allocation6], %s498
        %s500 = sand.u32 %s71, 1
        %s501 = smul.addr %s500, 8
        %s502 = scalar_lea.vmem [#allocation5], %s501
        %p503 = pneg %p84
        %p504 = pneg %p81
        %p505 = pneg %p105
        %p506 = pneg %p102
        %p507 = pneg %p126
        %p508 = pneg %p123
        %p509 = pneg %p147
        %p510 = pneg %p144
        %p511 = pneg %p168
        %p512 = pneg %p165
        %p513 = pneg %p189
        %p514 = pneg %p186
        %p515 = pneg %p210
        %p516 = pneg %p207
        %p517 = pneg %p231
        %p518 = pneg %p228
        %p519 = pneg %p252
        %p520 = pneg %p249
        %p521 = pneg %p278
        %p522 = pneg %p275
        %s523 = sand.u32 %s265, 1
        %s524 = scalar_lea.sflag [#allocation4], %s523
        %s525 = sand.u32 %s265, 1
        %s526 = smul.addr %s525, 16
        %s527 = scalar_lea.vmem [#allocation14], %s526
        %p528 = pneg %p304
        %p529 = pneg %p301
        %s530 = sand.u32 %s291, 1
        %s531 = scalar_lea.sflag [#allocation16], %s530
        %s532 = sand.u32 %s291, 1
        %s533 = smul.addr %s532, 16
        %s534 = scalar_lea.vmem [#allocation15], %s533
        %v535 = vld [vmem:[%s450] sm:$0xff]
        %v536 = vld [vmem:[%s450 + $0x8] sm:$0xff]
        %v537 = vld [vmem:[#allocation7] sm:$0xff]
        %v538 = vld [vmem:[#allocation7 + $0x8] sm:$0xff]
        %v539 = vld [vmem:[#allocation7 + $0x10] sm:$0xff]
        %v540 = vld [vmem:[#allocation7 + $0x18] sm:$0xff]
        %v541 = vld [vmem:[#allocation7 + $0x20] sm:$0xff]
        %v542 = vld [vmem:[#allocation7 + $0x28] sm:$0xff]
        %v543 = vld [vmem:[#allocation7 + $0x30] sm:$0xff]
        %v544 = vld [vmem:[#allocation7 + $0x38] sm:$0xff]
        %v545 = vld [vmem:[#allocation7 + $0x40] sm:$0xff]
        %v546 = vld [vmem:[#allocation7 + $0x48] sm:$0xff]
        %v547 = vld [vmem:[#allocation7 + $0x50] sm:$0xff]
        %v548 = vld [vmem:[#allocation7 + $0x58] sm:$0xff]
        %v549 = vld [vmem:[#allocation7 + $0x60] sm:$0xff]
        %v550 = vld [vmem:[#allocation7 + $0x68] sm:$0xff]
        %v551 = vld [vmem:[#allocation7 + $0x70] sm:$0xff]
        %v552 = vld [vmem:[#allocation7 + $0x78] sm:$0xff]
        %v553 = vld [vmem:[#allocation7 + $0x80] sm:$0xff]
        %v554 = vld [vmem:[#allocation7 + $0x88] sm:$0xff]
        %v555 = vld [vmem:[#allocation7 + $0x90] sm:$0xff]
        %v556 = vld [vmem:[#allocation7 + $0x98] sm:$0xff]
        %v557 = vld [vmem:[#allocation7 + $0xa0] sm:$0xff]
        %v558 = vld [vmem:[#allocation7 + $0xa8] sm:$0xff]
        %v559 = vld [vmem:[#allocation7 + $0xb0] sm:$0xff]
        %v560 = vld [vmem:[#allocation7 + $0xb8] sm:$0xff]
        %v561 = vld [vmem:[#allocation7 + $0xc0] sm:$0xff]
        %v562 = vld [vmem:[#allocation7 + $0xc8] sm:$0xff]
        %v563 = vld [vmem:[#allocation7 + $0xd0] sm:$0xff]
        %v564 = vld [vmem:[#allocation7 + $0xd8] sm:$0xff]
        %v565 = vld [vmem:[#allocation7 + $0xe0] sm:$0xff]
        %v566 = vld [vmem:[#allocation7 + $0xe8] sm:$0xff]
        %v567 = vld [vmem:[#allocation7 + $0xf0] sm:$0xff]
        %v568 = vld [vmem:[#allocation7 + $0xf8] sm:$0xff]
        %v569 = vld [vmem:[#allocation8] sm:$0x1]
        %v571 = vperm.slane %v569, 0
        %573 = vmatpush.msra.mxu0 %v552
        %574 = vmatpush.msra.mxu0 %v551
        %575 = vmatpush.msra.mxu0 %v550
        %576 = vmatpush.msra.mxu0 %v549
        %577 = vmatpush.msra.mxu0 %v548
        %578 = vmatpush.msra.mxu0 %v547
        %579 = vmatpush.msra.mxu0 %v546
        %580 = vmatpush.msra.mxu0 %v545
        %581 = vmatpush.msra.mxu0 %v544
        %582 = vmatpush.msra.mxu0 %v543
        %583 = vmatpush.msra.mxu0 %v542
        %584 = vmatpush.msra.mxu0 %v541
        %585 = vmatpush.msra.mxu0 %v540
        %586 = vmatpush.msra.mxu0 %v539
        %587 = vmatpush.msra.mxu0 %v538
        %588 = vmatpush.msra.mxu0 %v537
        %589 = vmatmul.f32.gmra.mxu0 %v535
        %v590 = vpop.f32.mrf.mxu0
        %v591 = vadd.f32 %v571, %v590
        %592 = vdwg.mxu0
        %593 = vmatpush.msra.mxu0 %v568
        %594 = vmatpush.msra.mxu0 %v567
        %595 = vmatpush.msra.mxu0 %v566
        %596 = vmatpush.msra.mxu0 %v565
        %597 = vmatpush.msra.mxu0 %v564
        %598 = vmatpush.msra.mxu0 %v563
        %599 = vmatpush.msra.mxu0 %v562
        %600 = vmatpush.msra.mxu0 %v561
        %601 = vmatpush.msra.mxu0 %v560
        %602 = vmatpush.msra.mxu0 %v559
        %603 = vmatpush.msra.mxu0 %v558
        %604 = vmatpush.msra.mxu0 %v557
        %605 = vmatpush.msra.mxu0 %v556
        %606 = vmatpush.msra.mxu0 %v555
        %607 = vmatpush.msra.mxu0 %v554
        %608 = vmatpush.msra.mxu0 %v553
        %609 = vmatmul.f32.gmra.mxu0 %v536
        %v610 = vpop.f32.mrf.mxu0
        %v611 = vadd.f32 %v591, %v610
        %612 = vdwg.mxu0
        %v613 = vmax.f32 %v611, 0.0
        %v614 = vld [vmem:[#allocation10] sm:$0xff]
        %v615 = vld [vmem:[#allocation10 + $0x8] sm:$0xff]
        %v616 = vld [vmem:[#allocation10 + $0x10] sm:$0xff]
        %v617 = vld [vmem:[#allocation10 + $0x18] sm:$0xff]
        %v618 = vld [vmem:[#allocation10 + $0x20] sm:$0xff]
        %v619 = vld [vmem:[#allocation10 + $0x28] sm:$0xff]
        %v620 = vld [vmem:[#allocation10 + $0x30] sm:$0xff]
        %v621 = vld [vmem:[#allocation10 + $0x38] sm:$0xff]
        %v622 = vld [vmem:[#allocation10 + $0x40] sm:$0xff]
        %v623 = vld [vmem:[#allocation10 + $0x48] sm:$0xff]
        %v624 = vld [vmem:[#allocation10 + $0x50] sm:$0xff]
        %v625 = vld [vmem:[#allocation10 + $0x58] sm:$0xff]
        %v626 = vld [vmem:[#allocation10 + $0x60] sm:$0xff]
        %v627 = vld [vmem:[#allocation10 + $0x68] sm:$0xff]
        %v628 = vld [vmem:[#allocation10 + $0x70] sm:$0xff]
        %v629 = vld [vmem:[#allocation10 + $0x78] sm:$0xff]
        %v630 = vld [vmem:[#allocation10 + $0x80] sm:$0xff]
        %v631 = vld [vmem:[#allocation10 + $0x88] sm:$0xff]
        %v632 = vld [vmem:[#allocation10 + $0x90] sm:$0xff]
        %v633 = vld [vmem:[#allocation10 + $0x98] sm:$0xff]
        %v634 = vld [vmem:[#allocation10 + $0xa0] sm:$0xff]
        %v635 = vld [vmem:[#allocation10 + $0xa8] sm:$0xff]
        %v636 = vld [vmem:[#allocation10 + $0xb0] sm:$0xff]
        %v637 = vld [vmem:[#allocation10 + $0xb8] sm:$0xff]
        %v638 = vld [vmem:[#allocation10 + $0xc0] sm:$0xff]
        %v639 = vld [vmem:[#allocation10 + $0xc8] sm:$0xff]
        %v640 = vld [vmem:[#allocation10 + $0xd0] sm:$0xff]
        %v641 = vld [vmem:[#allocation10 + $0xd8] sm:$0xff]
        %v642 = vld [vmem:[#allocation10 + $0xe0] sm:$0xff]
        %v643 = vld [vmem:[#allocation10 + $0xe8] sm:$0xff]
        %v644 = vld [vmem:[#allocation10 + $0xf0] sm:$0xff]
        %v645 = vld [vmem:[#allocation10 + $0xf8] sm:$0xff]
        %v646 = vld [vmem:[%s5] sm:$0x3]
        %v648 = vperm.slane %v646, 0
        %v649 = vperm.slane %v646, 1
        %652 = vmatpush.msra.mxu0 %v644
        %653 = vmatpush.msra.mxu0 %v642
        %654 = vmatpush.msra.mxu0 %v640
        %655 = vmatpush.msra.mxu0 %v638
        %656 = vmatpush.msra.mxu0 %v636
        %657 = vmatpush.msra.mxu0 %v634
        %658 = vmatpush.msra.mxu0 %v632
        %659 = vmatpush.msra.mxu0 %v630
        %660 = vmatpush.msra.mxu0 %v628
        %661 = vmatpush.msra.mxu0 %v626
        %662 = vmatpush.msra.mxu0 %v624
        %663 = vmatpush.msra.mxu0 %v622
        %664 = vmatpush.msra.mxu0 %v620
        %665 = vmatpush.msra.mxu0 %v618
        %666 = vmatpush.msra.mxu0 %v616
        %667 = vmatpush.msra.mxu0 %v614
        %668 = vmatmul.f32.gmra.mxu0 %v613
        %v669 = vpop.f32.mrf.mxu0
        %v670 = vadd.f32 %v648, %v669
        %671 = vdwg.mxu0
        %672 = vmatpush.msra.mxu0 %v645
        %673 = vmatpush.msra.mxu0 %v643
        %674 = vmatpush.msra.mxu0 %v641
        %675 = vmatpush.msra.mxu0 %v639
        %676 = vmatpush.msra.mxu0 %v637
        %677 = vmatpush.msra.mxu0 %v635
        %678 = vmatpush.msra.mxu0 %v633
        %679 = vmatpush.msra.mxu0 %v631
        %680 = vmatpush.msra.mxu0 %v629
        %681 = vmatpush.msra.mxu0 %v627
        %682 = vmatpush.msra.mxu0 %v625
        %683 = vmatpush.msra.mxu0 %v623
        %684 = vmatpush.msra.mxu0 %v621
        %685 = vmatpush.msra.mxu0 %v619
        %686 = vmatpush.msra.mxu0 %v617
        %687 = vmatpush.msra.mxu0 %v615
        %688 = vmatmul.f32.gmra.mxu0 %v613
        %v689 = vpop.f32.mrf.mxu0
        %v690 = vadd.f32 %v649, %v689
        %691 = vdwg.mxu0
        %v692 = vld [vmem:[%s460] sm:$0xff]
        %v693 = vmul.f32 %v690, %v692
        %v694 = vadd.f32 %v670, %v693
        %v695 = vld [vmem:[#allocation11] sm:$0xff]
        %v696 = vld [vmem:[#allocation11 + $0x8] sm:$0xff]
        %v697 = vld [vmem:[#allocation11 + $0x10] sm:$0xff]
        %v698 = vld [vmem:[#allocation11 + $0x18] sm:$0xff]
        %v699 = vld [vmem:[#allocation11 + $0x20] sm:$0xff]
        %v700 = vld [vmem:[#allocation11 + $0x28] sm:$0xff]
        %v701 = vld [vmem:[#allocation11 + $0x30] sm:$0xff]
        %v702 = vld [vmem:[#allocation11 + $0x38] sm:$0xff]
        %v703 = vld [vmem:[#allocation11 + $0x40] sm:$0xff]
        %v704 = vld [vmem:[#allocation11 + $0x48] sm:$0xff]
        %v705 = vld [vmem:[#allocation11 + $0x50] sm:$0xff]
        %v706 = vld [vmem:[#allocation11 + $0x58] sm:$0xff]
        %v707 = vld [vmem:[#allocation11 + $0x60] sm:$0xff]
        %v708 = vld [vmem:[#allocation11 + $0x68] sm:$0xff]
        %v709 = vld [vmem:[#allocation11 + $0x70] sm:$0xff]
        %v710 = vld [vmem:[#allocation11 + $0x78] sm:$0xff]
        %v711 = vld [vmem:[%s7] sm:$0x1]
        %v713 = vperm.slane %v711, 0
        %715 = vmatpush.msra.mxu0 %v710
        %716 = vmatpush.msra.mxu0 %v709
        %717 = vmatpush.msra.mxu0 %v708
        %718 = vmatpush.msra.mxu0 %v707
        %719 = vmatpush.msra.mxu0 %v706
        %720 = vmatpush.msra.mxu0 %v705
        %721 = vmatpush.msra.mxu0 %v704
        %722 = vmatpush.msra.mxu0 %v703
        %723 = vmatpush.msra.mxu0 %v702
        %724 = vmatpush.msra.mxu0 %v701
        %725 = vmatpush.msra.mxu0 %v700
        %726 = vmatpush.msra.mxu0 %v699
        %727 = vmatpush.msra.mxu0 %v698
        %728 = vmatpush.msra.mxu0 %v697
        %729 = vmatpush.msra.mxu0 %v696
        %730 = vmatpush.msra.mxu0 %v695
        %731 = vmatmul.f32.gmra.mxu0 %v694
        %v732 = vpop.f32.mrf.mxu0
        %v733 = vadd.f32 %v713, %v732
        %734 = vdwg.mxu0
        %v735 = vmax.f32 %v733, 0.0
        %v736 = vld [vmem:[#allocation13] sm:$0xff]
        %v737 = vld [vmem:[#allocation13 + $0x8] sm:$0xff]
        %v738 = vld [vmem:[#allocation13 + $0x10] sm:$0xff]
        %v739 = vld [vmem:[#allocation13 + $0x18] sm:$0xff]
        %v740 = vld [vmem:[#allocation13 + $0x20] sm:$0xff]
        %v741 = vld [vmem:[#allocation13 + $0x28] sm:$0xff]
        %v742 = vld [vmem:[#allocation13 + $0x30] sm:$0xff]
        %v743 = vld [vmem:[#allocation13 + $0x38] sm:$0xff]
        %v744 = vld [vmem:[#allocation13 + $0x40] sm:$0xff]
        %v745 = vld [vmem:[#allocation13 + $0x48] sm:$0xff]
        %v746 = vld [vmem:[#allocation13 + $0x50] sm:$0xff]
        %v747 = vld [vmem:[#allocation13 + $0x58] sm:$0xff]
        %v748 = vld [vmem:[#allocation13 + $0x60] sm:$0xff]
        %v749 = vld [vmem:[#allocation13 + $0x68] sm:$0xff]
        %v750 = vld [vmem:[#allocation13 + $0x70] sm:$0xff]
        %v751 = vld [vmem:[#allocation13 + $0x78] sm:$0xff]
        %v752 = vld [vmem:[#allocation13 + $0x80] sm:$0xff]
        %v753 = vld [vmem:[#allocation13 + $0x88] sm:$0xff]
        %v754 = vld [vmem:[#allocation13 + $0x90] sm:$0xff]
        %v755 = vld [vmem:[#allocation13 + $0x98] sm:$0xff]
        %v756 = vld [vmem:[#allocation13 + $0xa0] sm:$0xff]
        %v757 = vld [vmem:[#allocation13 + $0xa8] sm:$0xff]
        %v758 = vld [vmem:[#allocation13 + $0xb0] sm:$0xff]
        %v759 = vld [vmem:[#allocation13 + $0xb8] sm:$0xff]
        %v760 = vld [vmem:[#allocation13 + $0xc0] sm:$0xff]
        %v761 = vld [vmem:[#allocation13 + $0xc8] sm:$0xff]
        %v762 = vld [vmem:[#allocation13 + $0xd0] sm:$0xff]
        %v763 = vld [vmem:[#allocation13 + $0xd8] sm:$0xff]
        %v764 = vld [vmem:[#allocation13 + $0xe0] sm:$0xff]
        %v765 = vld [vmem:[#allocation13 + $0xe8] sm:$0xff]
        %v766 = vld [vmem:[#allocation13 + $0xf0] sm:$0xff]
        %v767 = vld [vmem:[#allocation13 + $0xf8] sm:$0xff]
        %v768 = vld [vmem:[%s9] sm:$0x3]
        %v770 = vperm.slane %v768, 0
        %v771 = vperm.slane %v768, 1
        %774 = vmatpush.msra.mxu0 %v766
        %775 = vmatpush.msra.mxu0 %v764
        %776 = vmatpush.msra.mxu0 %v762
        %777 = vmatpush.msra.mxu0 %v760
        %778 = vmatpush.msra.mxu0 %v758
        %779 = vmatpush.msra.mxu0 %v756
        %780 = vmatpush.msra.mxu0 %v754
        %781 = vmatpush.msra.mxu0 %v752
        %782 = vmatpush.msra.mxu0 %v750
        %783 = vmatpush.msra.mxu0 %v748
        %784 = vmatpush.msra.mxu0 %v746
        %785 = vmatpush.msra.mxu0 %v744
        %786 = vmatpush.msra.mxu0 %v742
        %787 = vmatpush.msra.mxu0 %v740
        %788 = vmatpush.msra.mxu0 %v738
        %789 = vmatpush.msra.mxu0 %v736
        %790 = vmatmul.f32.gmra.mxu0 %v735
        %v791 = vpop.f32.mrf.mxu0
        %v792 = vadd.f32 %v770, %v791
        %793 = vdwg.mxu0
        %794 = vmatpush.msra.mxu0 %v767
        %795 = vmatpush.msra.mxu0 %v765
        %796 = vmatpush.msra.mxu0 %v763
        %797 = vmatpush.msra.mxu0 %v761
        %798 = vmatpush.msra.mxu0 %v759
        %799 = vmatpush.msra.mxu0 %v757
        %800 = vmatpush.msra.mxu0 %v755
        %801 = vmatpush.msra.mxu0 %v753
        %802 = vmatpush.msra.mxu0 %v751
        %803 = vmatpush.msra.mxu0 %v749
        %804 = vmatpush.msra.mxu0 %v747
        %805 = vmatpush.msra.mxu0 %v745
        %806 = vmatpush.msra.mxu0 %v743
        %807 = vmatpush.msra.mxu0 %v741
        %808 = vmatpush.msra.mxu0 %v739
        %809 = vmatpush.msra.mxu0 %v737
        %810 = vmatmul.f32.gmra.mxu0 %v735
        %v811 = vpop.f32.mrf.mxu0
        %v812 = vadd.f32 %v771, %v811
        %813 = vdwg.mxu0
        %v814 = vxor.u32 %v792, 2147483648
        %v815 = vxor.u32 %v812, 2147483648
        %v816 = vmul.f32 %v814, 1.442695
        %v817 = vpow.pop %v816
        %v818 = vmul.f32 %v815, 1.442695
        %v819 = vpow.pop %v818
        %v820 = vadd.f32 %v817, 1.0
        %v821 = vadd.f32 %v819, 1.0
        %v822 = vrcp.pop %v820
        %v823 = vmul.f32 %v820, %v822
        %v824 = vsub.f32 1.0, %v823
        %v825 = vmul.f32 %v822, %v824
        %v826 = vadd.f32 %v822, %v825
        %vm827 = vweird.f32 %v820
        %vm828 = vweird.f32 %v822
        %vm829 = vmor %vm827, %vm828
        %v830 = vsel %vm829, %v822, %v826
        %v831 = vand.u32 2147483647, %v820
        %vm832 = vcmp.eq.f32.partialorder %v831, 8.507059e+37
        %v833 = vand.u32 %v820, 2147483648
        %v834 = vor.u32 1.1754944e-38, %v833
        %v835 = vsel %vm832, %v834, %v830
        %v836 = vmul.f32 1.0, %v835
        %v837 = vrcp.pop %v821
        %v838 = vmul.f32 %v821, %v837
        %v839 = vsub.f32 1.0, %v838
        %v840 = vmul.f32 %v837, %v839
        %v841 = vadd.f32 %v837, %v840
        %vm842 = vweird.f32 %v821
        %vm843 = vweird.f32 %v837
        %vm844 = vmor %vm842, %vm843
        %v845 = vsel %vm844, %v837, %v841
        %v846 = vand.u32 2147483647, %v821
        %vm847 = vcmp.eq.f32.partialorder %v846, 8.507059e+37
        %v848 = vand.u32 %v821, 2147483648
        %v849 = vor.u32 1.1754944e-38, %v848
        %v850 = vsel %vm847, %v849, %v845
        %v851 = vmul.f32 1.0, %v850
        %852 = vst [vmem:[%s527] sm:$0xff] %v836
        %853 = vst [vmem:[%s527 + $0x8] sm:$0xff] %v851
        %854 = vst [vmem:[%s534] sm:$0xff] %v670
        %855 = vst [vmem:[%s534 + $0x8] sm:$0xff] %v690
        %s856 = sand.u32 %s265, 1
        %s857 = scalar_lea.sflag [#allocation4], %s856
        %s858 = sand.u32 %s265, 1
        %s859 = smul.addr %s858, 16
        %s860 = scalar_lea.vmem [#allocation14], %s859
        %s861 = sand.u32 %s291, 1
        %s862 = scalar_lea.sflag [#allocation16], %s861
        %s863 = sand.u32 %s291, 1
        %s864 = smul.addr %s863, 16
        %s865 = scalar_lea.vmem [#allocation15], %s864
        // Predicated region
        $region89: #{tpu_custom_call.1} parent=59 // pred_check
          %p866 = pneg %p275
        $region90: #{tpu_custom_call.1} parent=59 // pred_check_branch
          %868 = sbr.rel (%p866) target = $region92
        $region91: #{tpu_custom_call.1} parent=59 // pred_region
          %870 = vsyncadd %s857, 0
          %s871 = smul.addr %s37, 2
          %s872 = smul.addr %s871, 8
          %s873 = scalar_lea.hbm %s10, %s872
          %s875 = sshll.u32 %s860, 4
          %s876 = int_to_ptr.vmem [resolvable:$true] %s875
          %s877 = sshll.u32 %s873, 4
          %s878 = int_to_ptr.hbm [resolvable:$true] %s877
          %880 = dma.vmem_to_hbm [thread:$0]  %s876, 256, %s878, %s857
        $region92: #{tpu_custom_call.1} parent=59 // pred_fallthru
          _
        // Predicated region
        $region93: #{tpu_custom_call.1} parent=59 // pred_check
          %p881 = pneg %p301
        $region94: #{tpu_custom_call.1} parent=59 // pred_check_branch
          %883 = sbr.rel (%p881) target = $region96
        $region95: #{tpu_custom_call.1} parent=59 // pred_region
          %885 = vsyncadd %s862, 0
          %s886 = smul.addr %s37, 2
          %s887 = smul.addr %s886, 8
          %s888 = scalar_lea.hbm %s11, %s887
          %s890 = sshll.u32 %s865, 4
          %s891 = int_to_ptr.vmem [resolvable:$true] %s890
          %s892 = sshll.u32 %s888, 4
          %s893 = int_to_ptr.hbm [resolvable:$true] %s892
          %895 = dma.vmem_to_hbm [thread:$0]  %s891, 256, %s893, %s862
        $region96: #{tpu_custom_call.1} parent=59 // pred_fallthru
          _
      $region60: #{tpu_custom_call.1} parent=5 // pred_fallthru
        _
      %p896 = scmp.le.s32.totalorder 2, %s32
      // Predicated region
      $region97: #{tpu_custom_call.1} parent=5 // pred_check
        %p897 = pneg %p896
      $region98: #{tpu_custom_call.1} parent=5 // pred_check_branch
        %899 = sbr.rel (%p897) target = $region100
      $region99: #{tpu_custom_call.1} parent=5 // pred_region
        %s900 = ssub.s32 %s32, 2
        // Predicated region
        $region101: #{tpu_custom_call.1} parent=99 // pred_check
          %p901 = pneg %p281
        $region102: #{tpu_custom_call.1} parent=99 // pred_check_branch
          %903 = sbr.rel (%p901) target = $region104
        $region103: #{tpu_custom_call.1} parent=99 // pred_region
          %s904 = sand.u32 %s266, 1
          %s905 = scalar_lea.sflag [#allocation4], %s904
          %s906 = sand.u32 %s266, 1
          %s907 = smul.addr %s906, 16
          %s908 = scalar_lea.vmem [#allocation14], %s907
          %910 = dma.done %s905, 256
        $region104: #{tpu_custom_call.1} parent=99 // pred_fallthru
          _
        // Predicated region
        $region105: #{tpu_custom_call.1} parent=99 // pred_check
          %p911 = pneg %p307
        $region106: #{tpu_custom_call.1} parent=99 // pred_check_branch
          %913 = sbr.rel (%p911) target = $region108
        $region107: #{tpu_custom_call.1} parent=99 // pred_region
          %s914 = sand.u32 %s292, 1
          %s915 = scalar_lea.sflag [#allocation16], %s914
          %s916 = sand.u32 %s292, 1
          %s917 = smul.addr %s916, 16
          %s918 = scalar_lea.vmem [#allocation15], %s917
          %920 = dma.done %s915, 256
        $region108: #{tpu_custom_call.1} parent=99 // pred_fallthru
          _
      $region100: #{tpu_custom_call.1} parent=5 // pred_fallthru
        _
    $region6: #{tpu_custom_call.1} parent=1 // loop_footer
      %s36 = sadd.s32 1, %s32
    $region7: #{tpu_custom_call.1} parent=1 // loop_footer_branch
      %31 = sbr.rel target = $region3
    $region8: #{tpu_custom_call.1} parent=1 // loop_exit
      _
    %921 = vsyncpa [#allocation3], 1
    %s922 = scalar_lea.sflag [#allocation3], 1
    %923 = vsyncpa %s922, 1
    %924 = vsyncpa [#allocation6], 1
    %s925 = scalar_lea.sflag [#allocation6], 1
    %926 = vsyncpa %s925, 1
    %927 = vsyncpa [#allocation9], 1
    %928 = vsyncpa [#allocation12], 1
    %929 = vsyncpa [#allocation4], 1
    %s930 = scalar_lea.sflag [#allocation4], 1
    %931 = vsyncpa %s930, 1
    %932 = vsyncpa [#allocation16], 1
    %s933 = scalar_lea.sflag [#allocation16], 1
    %934 = vsyncpa %s933, 1

</llo_original>
